<compile_context>
chip_gen: v7x
topology: tpu7x:2x2x1
jax: 0.10.0
libtpu: 0.0.40
codegen_flags: <defaults>
</compile_context>

<pallas_src>
import functools

import jax
import jax.numpy as jnp
from jax import lax
from jax.experimental import pallas as pl
from jax.experimental.pallas import tpu as pltpu


def _fused_affine_softmax_kernel(wt_ref, bt_ref, x_ref, out_ref):
    """out[:, tile] = softmax over rows of (W^T @ x_tile^T + b^T).

    wt_ref : [out, in]   compute dtype (VMEM-resident across grid steps)
    bt_ref : [out, 1]    f32          (VMEM-resident across grid steps)
    x_ref  : [TB, in]    compute dtype (per-step batch tile, natural layout)
    out_ref: [out, TB]   f32          (batch on lanes -> unmasked stores)
    """
    # Contract the shared `in` axis: (out,in) . (TB,in)^T -> (out, TB).
    logits = lax.dot_general(
        wt_ref[...], x_ref[...],
        dimension_numbers=(((1,), (1,)), ((), ())),
        preferred_element_type=jnp.float32) + bt_ref[...]

    # Numerically-stable softmax over the feature axis (sublane axis here, so
    # the reductions go to the XLU; exp goes to the EUP).
    m = jnp.max(logits, axis=0, keepdims=True)
    e = jnp.exp(logits - m)
    denom = jnp.sum(e, axis=0, keepdims=True)
    # Exact divide so every probability column sums to 1 (the approximate EUP
    # reciprocal previously violated the sum-to-one check).
    out_ref[...] = (e / denom).astype(out_ref.dtype)


def _collapse_affine_chain(params):
    """Fold a Linear chain (no nonlinearities) into a single affine map."""
    w_eff, b_eff = params[0]              # [in, h0], [1, h0]
    for w, b in params[1:]:
        b_eff = b_eff @ w + b
        w_eff = w_eff @ w
    return w_eff, b_eff                   # [in, out], [1, out]


def _round_up(n, m):
    return ((n + m - 1) // m) * m


def _cdiv(a, b):
    return (a + b - 1) // b


@functools.partial(jax.jit, static_argnames=("block_b", "compute_dtype"))
def policy_net_forward(x, params, *, block_b=8192,
                       compute_dtype=jnp.bfloat16):
    """x: [B, input_dim] f32; params: list of (W [in, out], b [1, out])."""
    batch, in_dim = x.shape
    w_eff, b_eff = _collapse_affine_chain(params)     # f32 collapse
    out_dim = w_eff.shape[1]

    # Resident operands: W^T in the compute dtype (fed to the MXU), bias kept
    # f32 since it is added after the f32 accumulate.
    wt = w_eff.T.astype(compute_dtype)    # [out, in]
    bt = b_eff.T                          # [out, 1] f32

    # Cast x BEFORE padding so the halved bytes apply to the whole stream.
    xc = x.astype(compute_dtype)

    # Batch tile: as large as block_b, but capped so that (a) tiny batches
    # don't over-pad and (b) batches >= 256 produce >= 2 grid steps, letting
    # the "parallel" axis shard across both TensorCores on v7x.
    tb = min(block_b, _round_up(max(_cdiv(batch, 2), 1), 128))
    b_pad = _round_up(batch, tb)
    x_pad = jnp.pad(xc, ((0, b_pad - batch), (0, 0)))  # zero rows -> bias-only
                                                       # softmax, no NaNs

    grid = (b_pad // tb,)
    out_t = pl.pallas_call(
        _fused_affine_softmax_kernel,
        out_shape=jax.ShapeDtypeStruct((out_dim, b_pad), jnp.float32),
        grid=grid,
        in_specs=[
            pl.BlockSpec((out_dim, in_dim), lambda i: (0, 0)),  # W^T resident
            pl.BlockSpec((out_dim, 1), lambda i: (0, 0)),       # b^T resident
            pl.BlockSpec((tb, in_dim), lambda i: (i, 0)),       # x batch tile
        ],
        out_specs=pl.BlockSpec((out_dim, tb), lambda i: (0, i)),
        compiler_params=pltpu.CompilerParams(
            dimension_semantics=("parallel",)),
    )(wt, bt, x_pad)

    # Back to the PyTorch layout [B, out]; under jit this fuses with the
    # slice.  (If a downstream consumer accepts [out, B], return out_t
    # directly and skip this pass over the result.)
    return out_t[:, :batch].T


def init_params(key, input_dim, out_dim, hidden_dims):
    """Deterministic init mirroring nn.Linear (uniform +-1/sqrt(fan_in)).

    W stored as [in, out] (transposed vs PyTorch), b as [1, out].
    """
    layer_in = [input_dim] + list(hidden_dims)
    layer_out = list(hidden_dims) + [out_dim]
    params = []
    for i_dim, o_dim in zip(layer_in, layer_out):
        key, kw, kb = jax.random.split(key, 3)
        bound = 1.0 / (i_dim ** 0.5)
        w = jax.random.uniform(kw, (i_dim, o_dim), jnp.float32, -bound, bound)
        b = jax.random.uniform(kb, (1, o_dim), jnp.float32, -bound, bound)
        params.append((w, b))
    return params


def _reference_forward(x, params):
    """Layer-by-layer f32 reference matching the PyTorch module exactly."""
    h = x
    for w, b in params:
        h = h @ w + b
    return jax.nn.softmax(h, axis=-1)


if __name__ == "__main__":
    key = jax.random.PRNGKey(0)
    k_x, k_p, k_x2 = jax.random.split(key, 3)

    input_dim, hidden_dims, out_dim = 16, [32, 32], 8
    params = init_params(k_p, input_dim, out_dim, hidden_dims)

    # Main case: rollout-sized batch, default bf16 streaming path.
    # With the tile cap this yields 2 grid steps of 512 columns.
    batch = 1024
    x = jax.random.normal(k_x, (batch, input_dim), dtype=jnp.float32)
    prob = jax.block_until_ready(policy_net_forward(x, params))
    ref = _reference_forward(x, params)
    assert prob.shape == (batch, out_dim)
    # bf16 input/weight rounding bounds the error well under 5e-3 here.
    assert jnp.allclose(prob, ref, atol=5e-3, rtol=0.0)
    # Exact in-kernel normalization: rows sum to 1 to f32 precision.
    assert jnp.allclose(jnp.sum(prob, axis=-1), 1.0, atol=1e-5)

    # Tiny / ragged batch on the f32 compute path: exercises lane padding and
    # validates the kernel math at tight tolerance.
    x_small = jax.random.normal(k_x2, (5, input_dim), dtype=jnp.float32)
    prob_small = jax.block_until_ready(
        policy_net_forward(x_small, params, compute_dtype=jnp.float32))
    ref_small = _reference_forward(x_small, params)
    assert prob_small.shape == (5, out_dim)
    assert jnp.allclose(prob_small, ref_small, atol=1e-4, rtol=1e-4)
    assert jnp.allclose(jnp.sum(prob_small, axis=-1), 1.0, atol=1e-5)

    print("KERNEL_OK")
</pallas_src>

<mosaic_0001>
module attributes {stable_mosaic.version = 11 : i64} {
  func.func @_fused_affine_softmax_kernel(%arg0: i32, %arg1: memref<8x16xbf16, #tpu.memory_space<vmem>>, %arg2: memref<8x1xf32, #tpu.memory_space<vmem>>, %arg3: memref<512x16xbf16, #tpu.memory_space<vmem>>, %arg4: memref<8x512xf32, #tpu.memory_space<vmem>>) attributes {dimension_semantics = [#tpu.dimension_semantics<parallel>], iteration_bounds = array<i64: 2>, scalar_prefetch = 0 : i64, scratch_operands = 0 : i64, tpu.core_type = #tpu.core_type<tc>, window_params = [{pipeline_mode = #tpu.pipeline_mode<synchronous>, transform_indices = @transform_0, window_bounds = array<i64: 8, 16>}, {pipeline_mode = #tpu.pipeline_mode<synchronous>, transform_indices = @transform_1, window_bounds = array<i64: 8, 1>}, {transform_indices = @transform_2, window_bounds = array<i64: 512, 16>}, {transform_indices = @transform_3, window_bounds = array<i64: 8, 512>}]} {
    %c0 = arith.constant 0 : index
    %c0_0 = arith.constant 0 : index
    %0 = vector.load %arg1[%c0, %c0_0] : memref<8x16xbf16, #tpu.memory_space<vmem>>, vector<8x16xbf16>
    %c0_1 = arith.constant 0 : index
    %c0_2 = arith.constant 0 : index
    %1 = vector.load %arg3[%c0_1, %c0_2] : memref<512x16xbf16, #tpu.memory_space<vmem>>, vector<512x16xbf16>
    %cst = arith.constant dense<0.000000e+00> : vector<8x512xf32>
    %2 = tpu.matmul %0, %1, %cst {dimension_numbers = #tpu.dot_dimension_numbers<[1], [1], [0], [0], [0, 0, 1, 0], [], []>} : vector<8x16xbf16>, vector<512x16xbf16>, vector<8x512xf32> -> vector<8x512xf32>
    %c0_3 = arith.constant 0 : index
    %c0_4 = arith.constant 0 : index
    %3 = vector.load %arg2[%c0_3, %c0_4] : memref<8x1xf32, #tpu.memory_space<vmem>>, vector<8x1xf32>
    %4 = vector.broadcast %3 : vector<8x1xf32> to vector<8x512xf32>
    %5 = arith.addf %2, %4 : vector<8x512xf32>
    %cst_5 = arith.constant dense<0xFF800000> : vector<512xf32>
    %6 = vector.multi_reduction <maximumf>, %5, %cst_5 [0] : vector<8x512xf32> to vector<512xf32>
    %7 = vector.shape_cast %6 : vector<512xf32> to vector<1x512xf32>
    %8 = vector.broadcast %7 : vector<1x512xf32> to vector<8x512xf32>
    %9 = arith.subf %5, %8 : vector<8x512xf32>
    %10 = math.exp %9 : vector<8x512xf32>
    %cst_6 = arith.constant dense<0.000000e+00> : vector<512xf32>
    %11 = vector.multi_reduction <add>, %10, %cst_6 [0] : vector<8x512xf32> to vector<512xf32>
    %12 = vector.shape_cast %11 : vector<512xf32> to vector<1x512xf32>
    %13 = vector.broadcast %12 : vector<1x512xf32> to vector<8x512xf32>
    %14 = arith.divf %10, %13 : vector<8x512xf32>
    %c0_7 = arith.constant 0 : index
    %c0_8 = arith.constant 0 : index
    %15 = vector.load %arg4[%c0_7, %c0_8] : memref<8x512xf32, #tpu.memory_space<vmem>>, vector<8x512xf32>
    tpu.vector_store %arg4[%c0_7, %c0_8], %14 {strides = array<i32>} : memref<8x512xf32, #tpu.memory_space<vmem>>, vector<8x512xf32>,
    return
  }
  func.func @transform_0(%arg0: i32) -> (i32, i32) {
    %c0_i32 = arith.constant 0 : i32
    %c0_i32_0 = arith.constant 0 : i32
    %c0_i32_1 = arith.constant 0 : i32
    return %c0_i32, %c0_i32_0 : i32, i32
  }
  func.func @transform_1(%arg0: i32) -> (i32, i32) {
    %c0_i32 = arith.constant 0 : i32
    %c0_i32_0 = arith.constant 0 : i32
    %c0_i32_1 = arith.constant 0 : i32
    return %c0_i32, %c0_i32_0 : i32, i32
  }
  func.func @transform_2(%arg0: i32) -> (i32, i32) {
    %c0_i32 = arith.constant 0 : i32
    %c0_i32_0 = arith.constant 0 : i32
    return %arg0, %c0_i32 : i32, i32
  }
  func.func @transform_3(%arg0: i32) -> (i32, i32) {
    %c0_i32 = arith.constant 0 : i32
    %c0_i32_0 = arith.constant 0 : i32
    return %c0_i32, %arg0 : i32, i32
  }
}

</mosaic_0001>

<llo_original>
// kernel: policy_net_forward.1
$region0: #{policy_net_forward.1}
  #allocation0 [shape = 'u32[]', space=smem, size = 0x4, offset = 0x4, fixed_abs, tag = 'smem constant byte address 0x4 - core index']
  #allocation1 [shape = 'u32[144,128]{1,0:T(1,128)}', space=vmem, size = 0x12000, scoped, tag = 'internal scratch']
  %s0 = inlined_call_operand.vmem [shape: bf16[8,16], index: 0, kind: input, shape index: {}]
  %s1 = inlined_call_operand.vmem [shape: f32[8,1], index: 1, kind: input, shape index: {}]
  %s2 = inlined_call_operand.vmem [shape: bf16[1024,16], index: 2, kind: input, shape index: {}]
  %s3 = inlined_call_operand.hbm [shape: f32[8,1024], index: 3, kind: output, shape index: {}]
  %s4 = sld [smem:[#allocation0]]
  $region45: #{policy_net_forward.1} parent=0
    _
  %s6 = ssub.s32 1, %s4
  %s7 = scalar_select 0, %s6, %s4
  $region1: #{policy_net_forward.1} parent=0
    #allocation2 [shape = 'u8[32768]{0}', space=vmem, size = 0x8000, scoped, tag = 'output window, operand 0']
    #allocation3 [shape = 's32[2]{0}', space=sflag, size = 0x8, scoped, tag = 'scoped memory for policy_net_forward.1']
    %8 = vsyncpa [#allocation3], 0
    %s9 = scalar_lea.sflag [#allocation3], 1
    %10 = vsyncpa %s9, 0
    loop: start=0, step=1, limit=4
    $region2: #{policy_net_forward.1} parent=1 // loop_pre_header
      _
    $region3: #{policy_net_forward.1} parent=1 // loop_header
      %s12 = sphi 0, %s16
      %p13 = scmp.ge.s32.totalorder %s12, 4
      %s20 = sphi 0, %s20
      %s22 = sphi 0, %s20
      %s23 = sphi 0, %s22
      %s37 = sphi 0, %s23
      %s41 = sphi 0, %s41
      %s43 = sphi 0, %s41
      %s44 = sphi 0, %s43
      %s58 = sphi 0, %s44
      %s64 = sphi 0, %s66
      %s67 = sphi 0, %s64
      %s68 = sphi 0, %s67
      %s84 = sphi 0, %s68
      %s90 = sphi 0, %s92
      %s93 = sphi 0, %s90
      %s94 = sphi 0, %s93
      %s110 = sphi 0, %s94
    $region4: #{policy_net_forward.1} parent=1 // loop_header_branch
      %15 = sbr.rel (%p13) target = $region8
    $region5: #{policy_net_forward.1} parent=1 // loop_body
      %s17 = ssub.s32 %s12, 1
      %s18 = ssub.s32 %s12, 2
      %s19 = sadd.s32 %s12, 1
      %s21 = sadd.s32 %s20, 1
      %p24 = scmp.eq.s32.totalorder %s12, 1
      %p25 = scmp.ne.s32.totalorder %s20, %s22
      %p26 = scmp.eq.s32.totalorder %s12, 0
      %p27 = por %p25, %p26
      %p28 = scmp.ne.s32.totalorder %s20, %s22
      %p29 = scmp.eq.s32.totalorder %s17, 1
      %p30 = por %p28, %p29
      %p31 = scmp.ne.s32.totalorder %s22, %s23
      %p32 = scmp.eq.s32.totalorder %s17, 0
      %p33 = por %p31, %p32
      %p34 = scmp.ne.s32.totalorder %s22, %s23
      %p35 = scmp.eq.s32.totalorder %s18, 1
      %p36 = por %p34, %p35
      %p38 = scmp.ne.s32.totalorder %s23, %s37
      %p39 = scmp.eq.s32.totalorder %s18, 0
      %p40 = por %p38, %p39
      %s42 = sadd.s32 %s41, 1
      %p45 = scmp.eq.s32.totalorder %s12, 1
      %p46 = scmp.ne.s32.totalorder %s41, %s43
      %p47 = scmp.eq.s32.totalorder %s12, 0
      %p48 = por %p46, %p47
      %p49 = scmp.ne.s32.totalorder %s41, %s43
      %p50 = scmp.eq.s32.totalorder %s17, 1
      %p51 = por %p49, %p50
      %p52 = scmp.ne.s32.totalorder %s43, %s44
      %p53 = scmp.eq.s32.totalorder %s17, 0
      %p54 = por %p52, %p53
      %p55 = scmp.ne.s32.totalorder %s43, %s44
      %p56 = scmp.eq.s32.totalorder %s18, 1
      %p57 = por %p55, %p56
      %p59 = scmp.ne.s32.totalorder %s44, %s58
      %p60 = scmp.eq.s32.totalorder %s18, 0
      %p61 = por %p59, %p60
      %s62 = ssub.s32 %s12, %s19
      %p63 = scmp.eq.s32.totalorder %s62, 0
      %s65 = sadd.s32 %s64, 1
      %s66 = scalar_select %p63, %s64, %s65
      %p69 = pneg %p63
      %p70 = scmp.eq.s32.totalorder %s12, 1
      %p71 = por %p69, %p70
      %p72 = scmp.ne.s32.totalorder %s64, %s67
      %p73 = scmp.eq.s32.totalorder %s12, 0
      %p74 = por %p72, %p73
      %p75 = scmp.ne.s32.totalorder %s64, %s67
      %p76 = scmp.eq.s32.totalorder %s17, 1
      %p77 = por %p75, %p76
      %p78 = scmp.ne.s32.totalorder %s67, %s68
      %p79 = scmp.eq.s32.totalorder %s17, 0
      %p80 = por %p78, %p79
      %p81 = scmp.ne.s32.totalorder %s67, %s68
      %p82 = scmp.eq.s32.totalorder %s18, 1
      %p83 = por %p81, %p82
      %p85 = scmp.ne.s32.totalorder %s68, %s84
      %p86 = scmp.eq.s32.totalorder %s18, 0
      %p87 = por %p85, %p86
      %s88 = ssub.s32 %s12, %s19
      %p89 = scmp.eq.s32.totalorder %s88, 0
      %s91 = sadd.s32 %s90, 1
      %s92 = scalar_select %p89, %s90, %s91
      %p95 = pneg %p89
      %p96 = scmp.eq.s32.totalorder %s12, 1
      %p97 = por %p95, %p96
      %p98 = scmp.ne.s32.totalorder %s90, %s93
      %p99 = scmp.eq.s32.totalorder %s12, 0
      %p100 = por %p98, %p99
      %p101 = scmp.ne.s32.totalorder %s90, %s93
      %p102 = scmp.eq.s32.totalorder %s17, 1
      %p103 = por %p101, %p102
      %p104 = scmp.ne.s32.totalorder %s93, %s94
      %p105 = scmp.eq.s32.totalorder %s17, 0
      %p106 = por %p104, %p105
      %p107 = scmp.ne.s32.totalorder %s93, %s94
      %p108 = scmp.eq.s32.totalorder %s18, 1
      %p109 = por %p107, %p108
      %p111 = scmp.ne.s32.totalorder %s94, %s110
      %p112 = scmp.eq.s32.totalorder %s18, 0
      %p113 = por %p111, %p112
      %p114 = scmp.le.s32.totalorder 1, %s12
      %p115 = scmp.lt.s32.totalorder %s12, 3
      %p116 = pnand %p114, %p115
      %p117 = pneg %p116
      // Predicated region
      $region9: #{policy_net_forward.1} parent=5 // pred_check
        _
      $region10: #{policy_net_forward.1} parent=5 // pred_check_branch
        %119 = sbr.rel (%p116) target = $region12
      $region11: #{policy_net_forward.1} parent=5 // pred_region
        %s120 = ssub.s32 %s12, 1
        // Predicated region
        $region13: #{policy_net_forward.1} parent=11 // pred_check
          %p121 = pneg %p33
        $region14: #{policy_net_forward.1} parent=11 // pred_check_branch
          %123 = sbr.rel (%p121) target = $region16
        $region15: #{policy_net_forward.1} parent=11 // pred_region
          _
        $region16: #{policy_net_forward.1} parent=11 // pred_fallthru
          _
        // Predicated region
        $region17: #{policy_net_forward.1} parent=11 // pred_check
          %p124 = pneg %p54
        $region18: #{policy_net_forward.1} parent=11 // pred_check_branch
          %126 = sbr.rel (%p124) target = $region20
        $region19: #{policy_net_forward.1} parent=11 // pred_region
          _
        $region20: #{policy_net_forward.1} parent=11 // pred_fallthru
          _
      $region12: #{policy_net_forward.1} parent=5 // pred_fallthru
        _
      %p127 = scmp.lt.s32.totalorder %s12, 2
      // Predicated region
      $region21: #{policy_net_forward.1} parent=5 // pred_check
        %p128 = pneg %p127
      $region22: #{policy_net_forward.1} parent=5 // pred_check_branch
        %130 = sbr.rel (%p128) target = $region24
      $region23: #{policy_net_forward.1} parent=5 // pred_region
        // Predicated region
        $region25: #{policy_net_forward.1} parent=23 // pred_check
          %p131 = pneg %p74
        $region26: #{policy_net_forward.1} parent=23 // pred_check_branch
          %133 = sbr.rel (%p131) target = $region28
        $region27: #{policy_net_forward.1} parent=23 // pred_region
          %s134 = smul.u32 64, %s12
          %p135 = scmp.lt.s32.totalorder %s134, 127
          %s136 = scalar_select %p135, %s134, 127
          %s137 = smul.addr %s136, 4
          %s138 = scalar_lea.vmem %s2, %s137
          %s139 = smul.u32 64, %s12
        $region28: #{policy_net_forward.1} parent=23 // pred_fallthru
          _
      $region24: #{policy_net_forward.1} parent=5 // pred_fallthru
        _
      %p140 = scmp.le.s32.totalorder 1, %s12
      %p141 = scmp.lt.s32.totalorder %s12, 3
      %p142 = pnand %p140, %p141
      %p143 = pneg %p142
      // Predicated region
      $region29: #{policy_net_forward.1} parent=5 // pred_check
        _
      $region30: #{policy_net_forward.1} parent=5 // pred_check_branch
        %145 = sbr.rel (%p142) target = $region32
      $region31: #{policy_net_forward.1} parent=5 // pred_region
        %s146 = ssub.s32 %s12, 1
        %p147 = pneg %p33
        %p148 = pneg %p30
        %p149 = pneg %p54
        %p150 = pneg %p51
        %s151 = smul.u32 64, %s17
        %p152 = scmp.lt.s32.totalorder %s151, 127
        %s153 = scalar_select %p152, %s151, 127
        %s154 = smul.addr %s153, 4
        %s155 = scalar_lea.vmem %s2, %s154
        %p156 = pneg %p80
        %p157 = pneg %p77
        %p158 = pneg %p106
        %p159 = pneg %p103
        %s160 = sand.u32 %s93, 1
        %s161 = scalar_lea.sflag [#allocation3], %s160
        %s162 = sand.u32 %s93, 1
        %s163 = smul.addr %s162, 32
        %s164 = scalar_lea.vmem [#allocation2], %s163
        %s165 = smul.u32 64, %s17
        %p166 = scmp.lt.s32.totalorder %s165, 127
        %s167 = scalar_select %p166, %s165, 127
        %s168 = smul.addr %s167, 4
        %s169 = scalar_lea.vmem %s2, %s168
        %s170 = smul.u32 64, %s17
        %s171 = smul.u32 4, %s17
        %v173 = vld [vmem:[%s0] sm:$0xf]
        %v174 = vld [vmem:[%s169] sm:$0xf]
        %v175 = vld [vmem:[%s169 + $0x4] sm:$0xf]
        %v176 = vld [vmem:[%s169 + $0x8] sm:$0xf]
        %v177 = vld [vmem:[%s169 + $0xc] sm:$0xf]
        %v178 = vld [vmem:[%s169 + $0x10] sm:$0xf]
        %v179 = vld [vmem:[%s169 + $0x14] sm:$0xf]
        %v180 = vld [vmem:[%s169 + $0x18] sm:$0xf]
        %v181 = vld [vmem:[%s169 + $0x1c] sm:$0xf]
        %v182 = vld [vmem:[%s169 + $0x20] sm:$0xf]
        %v183 = vld [vmem:[%s169 + $0x24] sm:$0xf]
        %v184 = vld [vmem:[%s169 + $0x28] sm:$0xf]
        %v185 = vld [vmem:[%s169 + $0x2c] sm:$0xf]
        %v186 = vld [vmem:[%s169 + $0x30] sm:$0xf]
        %v187 = vld [vmem:[%s169 + $0x34] sm:$0xf]
        %v188 = vld [vmem:[%s169 + $0x38] sm:$0xf]
        %v189 = vld [vmem:[%s169 + $0x3c] sm:$0xf]
        %v190 = vld [vmem:[%s169 + $0x40] sm:$0xf]
        %v191 = vld [vmem:[%s169 + $0x44] sm:$0xf]
        %v192 = vld [vmem:[%s169 + $0x48] sm:$0xf]
        %v193 = vld [vmem:[%s169 + $0x4c] sm:$0xf]
        %v194 = vld [vmem:[%s169 + $0x50] sm:$0xf]
        %v195 = vld [vmem:[%s169 + $0x54] sm:$0xf]
        %v196 = vld [vmem:[%s169 + $0x58] sm:$0xf]
        %v197 = vld [vmem:[%s169 + $0x5c] sm:$0xf]
        %v198 = vld [vmem:[%s169 + $0x60] sm:$0xf]
        %v199 = vld [vmem:[%s169 + $0x64] sm:$0xf]
        %v200 = vld [vmem:[%s169 + $0x68] sm:$0xf]
        %v201 = vld [vmem:[%s169 + $0x6c] sm:$0xf]
        %v202 = vld [vmem:[%s169 + $0x70] sm:$0xf]
        %v203 = vld [vmem:[%s169 + $0x74] sm:$0xf]
        %v204 = vld [vmem:[%s169 + $0x78] sm:$0xf]
        %v205 = vld [vmem:[%s169 + $0x7c] sm:$0xf]
        %v206 = vld [vmem:[%s169 + $0x80] sm:$0xf]
        %v207 = vld [vmem:[%s169 + $0x84] sm:$0xf]
        %v208 = vld [vmem:[%s169 + $0x88] sm:$0xf]
        %v209 = vld [vmem:[%s169 + $0x8c] sm:$0xf]
        %v210 = vld [vmem:[%s169 + $0x90] sm:$0xf]
        %v211 = vld [vmem:[%s169 + $0x94] sm:$0xf]
        %v212 = vld [vmem:[%s169 + $0x98] sm:$0xf]
        %v213 = vld [vmem:[%s169 + $0x9c] sm:$0xf]
        %v214 = vld [vmem:[%s169 + $0xa0] sm:$0xf]
        %v215 = vld [vmem:[%s169 + $0xa4] sm:$0xf]
        %v216 = vld [vmem:[%s169 + $0xa8] sm:$0xf]
        %v217 = vld [vmem:[%s169 + $0xac] sm:$0xf]
        %v218 = vld [vmem:[%s169 + $0xb0] sm:$0xf]
        %v219 = vld [vmem:[%s169 + $0xb4] sm:$0xf]
        %v220 = vld [vmem:[%s169 + $0xb8] sm:$0xf]
        %v221 = vld [vmem:[%s169 + $0xbc] sm:$0xf]
        %v222 = vld [vmem:[%s169 + $0xc0] sm:$0xf]
        %v223 = vld [vmem:[%s169 + $0xc4] sm:$0xf]
        %v224 = vld [vmem:[%s169 + $0xc8] sm:$0xf]
        %v225 = vld [vmem:[%s169 + $0xcc] sm:$0xf]
        %v226 = vld [vmem:[%s169 + $0xd0] sm:$0xf]
        %v227 = vld [vmem:[%s169 + $0xd4] sm:$0xf]
        %v228 = vld [vmem:[%s169 + $0xd8] sm:$0xf]
        %v229 = vld [vmem:[%s169 + $0xdc] sm:$0xf]
        %v230 = vld [vmem:[%s169 + $0xe0] sm:$0xf]
        %v231 = vld [vmem:[%s169 + $0xe4] sm:$0xf]
        %v232 = vld [vmem:[%s169 + $0xe8] sm:$0xf]
        %v233 = vld [vmem:[%s169 + $0xec] sm:$0xf]
        %v234 = vld [vmem:[%s169 + $0xf0] sm:$0xf]
        %v235 = vld [vmem:[%s169 + $0xf4] sm:$0xf]
        %v236 = vld [vmem:[%s169 + $0xf8] sm:$0xf]
        %v237 = vld [vmem:[%s169 + $0xfc] sm:$0xf]
        %v238 = vld [vmem:[%s1] sm:$0xff]
        %240 = vset.pattern.permute.xlu0 0
        %241 = vperm.xlu0 %240, %v238
        %v242 = vpop.permute.xlu0 %241
        %v308 = vunpack.c.l.b16 %v174
        %v309 = vunpack.c.l.b16 %v175
        %v310 = vunpack.c.l.b16 %v176
        %v311 = vunpack.c.l.b16 %v177
        %v312 = vunpack.c.l.b16 %v178
        %v313 = vunpack.c.l.b16 %v179
        %v314 = vunpack.c.l.b16 %v180
        %v315 = vunpack.c.l.b16 %v181
        %v316 = vunpack.c.l.b16 %v182
        %v317 = vunpack.c.l.b16 %v183
        %v318 = vunpack.c.l.b16 %v184
        %v319 = vunpack.c.l.b16 %v185
        %v320 = vunpack.c.l.b16 %v186
        %v321 = vunpack.c.l.b16 %v187
        %v322 = vunpack.c.l.b16 %v188
        %v323 = vunpack.c.l.b16 %v189
        %v324 = vunpack.c.l.b16 %v190
        %v325 = vunpack.c.l.b16 %v191
        %v326 = vunpack.c.l.b16 %v192
        %v327 = vunpack.c.l.b16 %v193
        %v328 = vunpack.c.l.b16 %v194
        %v329 = vunpack.c.l.b16 %v195
        %v330 = vunpack.c.l.b16 %v196
        %v331 = vunpack.c.l.b16 %v197
        %v332 = vunpack.c.l.b16 %v198
        %v333 = vunpack.c.l.b16 %v199
        %v334 = vunpack.c.l.b16 %v200
        %v335 = vunpack.c.l.b16 %v201
        %v336 = vunpack.c.l.b16 %v202
        %v337 = vunpack.c.l.b16 %v203
        %v338 = vunpack.c.l.b16 %v204
        %v339 = vunpack.c.l.b16 %v205
        %v340 = vunpack.c.l.b16 %v206
        %v341 = vunpack.c.l.b16 %v207
        %v342 = vunpack.c.l.b16 %v208
        %v343 = vunpack.c.l.b16 %v209
        %v344 = vunpack.c.l.b16 %v210
        %v345 = vunpack.c.l.b16 %v211
        %v346 = vunpack.c.l.b16 %v212
        %v347 = vunpack.c.l.b16 %v213
        %v348 = vunpack.c.l.b16 %v214
        %v349 = vunpack.c.l.b16 %v215
        %v350 = vunpack.c.l.b16 %v216
        %v351 = vunpack.c.l.b16 %v217
        %v352 = vunpack.c.l.b16 %v218
        %v353 = vunpack.c.l.b16 %v219
        %v354 = vunpack.c.l.b16 %v220
        %v355 = vunpack.c.l.b16 %v221
        %v356 = vunpack.c.l.b16 %v222
        %v357 = vunpack.c.l.b16 %v223
        %v358 = vunpack.c.l.b16 %v224
        %v359 = vunpack.c.l.b16 %v225
        %v360 = vunpack.c.l.b16 %v226
        %v361 = vunpack.c.l.b16 %v227
        %v362 = vunpack.c.l.b16 %v228
        %v363 = vunpack.c.l.b16 %v229
        %v364 = vunpack.c.l.b16 %v230
        %v365 = vunpack.c.l.b16 %v231
        %v366 = vunpack.c.l.b16 %v232
        %v367 = vunpack.c.l.b16 %v233
        %v368 = vunpack.c.l.b16 %v234
        %v369 = vunpack.c.l.b16 %v235
        %v370 = vunpack.c.l.b16 %v236
        %v371 = vunpack.c.l.b16 %v237
        %v372 = vpack.c.b16 %v309, %v308
        %v373 = vpack.c.b16 %v311, %v310
        %v374 = vpack.c.b16 %v313, %v312
        %v375 = vpack.c.b16 %v315, %v314
        %v376 = vpack.c.b16 %v317, %v316
        %v377 = vpack.c.b16 %v319, %v318
        %v378 = vpack.c.b16 %v321, %v320
        %v379 = vpack.c.b16 %v323, %v322
        %v380 = vpack.c.b16 %v325, %v324
        %v381 = vpack.c.b16 %v327, %v326
        %v382 = vpack.c.b16 %v329, %v328
        %v383 = vpack.c.b16 %v331, %v330
        %v384 = vpack.c.b16 %v333, %v332
        %v385 = vpack.c.b16 %v335, %v334
        %v386 = vpack.c.b16 %v337, %v336
        %v387 = vpack.c.b16 %v339, %v338
        %v388 = vpack.c.b16 %v341, %v340
        %v389 = vpack.c.b16 %v343, %v342
        %v390 = vpack.c.b16 %v345, %v344
        %v391 = vpack.c.b16 %v347, %v346
        %v392 = vpack.c.b16 %v349, %v348
        %v393 = vpack.c.b16 %v351, %v350
        %v394 = vpack.c.b16 %v353, %v352
        %v395 = vpack.c.b16 %v355, %v354
        %v396 = vpack.c.b16 %v357, %v356
        %v397 = vpack.c.b16 %v359, %v358
        %v398 = vpack.c.b16 %v361, %v360
        %v399 = vpack.c.b16 %v363, %v362
        %v400 = vpack.c.b16 %v365, %v364
        %v401 = vpack.c.b16 %v367, %v366
        %v402 = vpack.c.b16 %v369, %v368
        %v403 = vpack.c.b16 %v371, %v370
        %vm404 = vcmask 130048
        %v406 = vsel %vm404, %v173, 0
        %v409 = vsel %vm404, %v372, 0
        %v412 = vsel %vm404, %v373, 0
        %v415 = vsel %vm404, %v374, 0
        %v418 = vsel %vm404, %v375, 0
        %v421 = vsel %vm404, %v376, 0
        %v424 = vsel %vm404, %v377, 0
        %v427 = vsel %vm404, %v378, 0
        %v430 = vsel %vm404, %v379, 0
        %v433 = vsel %vm404, %v380, 0
        %v436 = vsel %vm404, %v381, 0
        %v439 = vsel %vm404, %v382, 0
        %v442 = vsel %vm404, %v383, 0
        %v445 = vsel %vm404, %v384, 0
        %v448 = vsel %vm404, %v385, 0
        %v451 = vsel %vm404, %v386, 0
        %v454 = vsel %vm404, %v387, 0
        %v457 = vsel %vm404, %v388, 0
        %v460 = vsel %vm404, %v389, 0
        %v463 = vsel %vm404, %v390, 0
        %v466 = vsel %vm404, %v391, 0
        %v469 = vsel %vm404, %v392, 0
        %v472 = vsel %vm404, %v393, 0
        %v475 = vsel %vm404, %v394, 0
        %v478 = vsel %vm404, %v395, 0
        %v481 = vsel %vm404, %v396, 0
        %v484 = vsel %vm404, %v397, 0
        %v487 = vsel %vm404, %v398, 0
        %v490 = vsel %vm404, %v399, 0
        %v493 = vsel %vm404, %v400, 0
        %v496 = vsel %vm404, %v401, 0
        %v499 = vsel %vm404, %v402, 0
        %v502 = vsel %vm404, %v403, 0
        %504 = vmatprep.subr.bf16.mxu0 0
        %505 = vmatpush1.bf16.xpose.msra.mxu0 %v409
        %506 = vmatprep.subr.bf16.mxu0 0
        %507 = vmatpush1.bf16.xpose.msra.mxu0 %v412
        %508 = vmatprep.subr.bf16.mxu0 0
        %509 = vmatpush1.bf16.xpose.msra.mxu0 %v415
        %510 = vmatprep.subr.bf16.mxu0 0
        %511 = vmatpush1.bf16.xpose.msra.mxu0 %v418
        %512 = vmatprep.subr.bf16.mxu0 0
        %513 = vmatpush1.bf16.xpose.msra.mxu0 %v421
        %514 = vmatprep.subr.bf16.mxu0 0
        %515 = vmatpush1.bf16.xpose.msra.mxu0 %v424
        %516 = vmatprep.subr.bf16.mxu0 0
        %517 = vmatpush1.bf16.xpose.msra.mxu0 %v427
        %518 = vmatprep.subr.bf16.mxu0 0
        %519 = vmatpush1.bf16.xpose.msra.mxu0 %v430
        %520 = vmatprep.subr.bf16.mxu0 0
        %521 = vmatpush1.bf16.xpose.msra.mxu0 %v433
        %522 = vmatprep.subr.bf16.mxu0 0
        %523 = vmatpush1.bf16.xpose.msra.mxu0 %v436
        %524 = vmatprep.subr.bf16.mxu0 0
        %525 = vmatpush1.bf16.xpose.msra.mxu0 %v439
        %526 = vmatprep.subr.bf16.mxu0 0
        %527 = vmatpush1.bf16.xpose.msra.mxu0 %v442
        %528 = vmatprep.subr.bf16.mxu0 0
        %529 = vmatpush1.bf16.xpose.msra.mxu0 %v445
        %530 = vmatprep.subr.bf16.mxu0 0
        %531 = vmatpush1.bf16.xpose.msra.mxu0 %v448
        %532 = vmatprep.subr.bf16.mxu0 0
        %533 = vmatpush1.bf16.xpose.msra.mxu0 %v451
        %534 = vmatprep.subr.bf16.mxu0 0
        %535 = vmatpush1.bf16.xpose.msra.mxu0 %v454
        %536 = vmatprep.mubr.bf16.mxu0 0
        %537 = vmatmul.mubr.bf16.gmra.mrb[0].mxu0 %v406
        %v538 = vpop.f32.mrb[0].mxu0
        %v539 = vadd.f32 %v242, %v538
        %v540 = vpop.f32.mrb[0].mxu0
        %v541 = vadd.f32 %v242, %v540
        %v542 = vpop.f32.mrb[0].mxu0
        %v543 = vpop.f32.mrb[0].mxu0
        %544 = vdwg.mxu0
        %545 = vmatprep.subr.bf16.mxu0 0
        %546 = vmatpush1.bf16.xpose.msra.mxu0 %v457
        %547 = vmatprep.subr.bf16.mxu0 0
        %548 = vmatpush1.bf16.xpose.msra.mxu0 %v460
        %549 = vmatprep.subr.bf16.mxu0 0
        %550 = vmatpush1.bf16.xpose.msra.mxu0 %v463
        %551 = vmatprep.subr.bf16.mxu0 0
        %552 = vmatpush1.bf16.xpose.msra.mxu0 %v466
        %553 = vmatprep.subr.bf16.mxu0 0
        %554 = vmatpush1.bf16.xpose.msra.mxu0 %v469
        %555 = vmatprep.subr.bf16.mxu0 0
        %556 = vmatpush1.bf16.xpose.msra.mxu0 %v472
        %557 = vmatprep.subr.bf16.mxu0 0
        %558 = vmatpush1.bf16.xpose.msra.mxu0 %v475
        %559 = vmatprep.subr.bf16.mxu0 0
        %560 = vmatpush1.bf16.xpose.msra.mxu0 %v478
        %561 = vmatprep.subr.bf16.mxu0 0
        %562 = vmatpush1.bf16.xpose.msra.mxu0 %v481
        %563 = vmatprep.subr.bf16.mxu0 0
        %564 = vmatpush1.bf16.xpose.msra.mxu0 %v484
        %565 = vmatprep.subr.bf16.mxu0 0
        %566 = vmatpush1.bf16.xpose.msra.mxu0 %v487
        %567 = vmatprep.subr.bf16.mxu0 0
        %568 = vmatpush1.bf16.xpose.msra.mxu0 %v490
        %569 = vmatprep.subr.bf16.mxu0 0
        %570 = vmatpush1.bf16.xpose.msra.mxu0 %v493
        %571 = vmatprep.subr.bf16.mxu0 0
        %572 = vmatpush1.bf16.xpose.msra.mxu0 %v496
        %573 = vmatprep.subr.bf16.mxu0 0
        %574 = vmatpush1.bf16.xpose.msra.mxu0 %v499
        %575 = vmatprep.subr.bf16.mxu0 0
        %576 = vmatpush1.bf16.xpose.msra.mxu0 %v502
        %577 = vmatprep.mubr.bf16.mxu0 0
        %578 = vmatmul.mubr.bf16.gmra.mrb[0].mxu0 %v406
        %v579 = vpop.f32.mrb[0].mxu0
        %v580 = vadd.f32 %v242, %v579
        %v581 = vpop.f32.mrb[0].mxu0
        %v582 = vadd.f32 %v242, %v581
        %v583 = vpop.f32.mrb[0].mxu0
        %v584 = vpop.f32.mrb[0].mxu0
        %585 = vdwg.mxu0
        %v586 = vrot.slane %v539, 4
        %v587 = vmax.f32 %v539, %v586
        %v588 = vrot.slane %v587, 2
        %v589 = vmax.f32 %v587, %v588
        %v590 = vrot.slane %v589, 1
        %v591 = vmax.f32 %v589, %v590
        %v592 = vrot.slane %v541, 4
        %v593 = vmax.f32 %v541, %v592
        %v594 = vrot.slane %v593, 2
        %v595 = vmax.f32 %v593, %v594
        %v596 = vrot.slane %v595, 1
        %v597 = vmax.f32 %v595, %v596
        %v598 = vrot.slane %v580, 4
        %v599 = vmax.f32 %v580, %v598
        %v600 = vrot.slane %v599, 2
        %v601 = vmax.f32 %v599, %v600
        %v602 = vrot.slane %v601, 1
        %v603 = vmax.f32 %v601, %v602
        %v604 = vrot.slane %v582, 4
        %v605 = vmax.f32 %v582, %v604
        %v606 = vrot.slane %v605, 2
        %v607 = vmax.f32 %v605, %v606
        %v608 = vrot.slane %v607, 1
        %v609 = vmax.f32 %v607, %v608
        %v610 = vsub.f32 %v539, %v591
        %v611 = vsub.f32 %v541, %v597
        %v612 = vsub.f32 %v580, %v603
        %v613 = vsub.f32 %v582, %v609
        %v614 = vmul.f32 %v610, 1.442695
        %v615 = vpow.pop %v614
        %v616 = vmul.f32 %v611, 1.442695
        %v617 = vpow.pop %v616
        %v618 = vmul.f32 %v612, 1.442695
        %v619 = vpow.pop %v618
        %v620 = vmul.f32 %v613, 1.442695
        %v621 = vpow.pop %v620
        %v622 = vrot.slane %v615, 4
        %v623 = vadd.f32 %v615, %v622
        %v624 = vrot.slane %v623, 2
        %v625 = vadd.f32 %v623, %v624
        %v626 = vrot.slane %v625, 1
        %v627 = vadd.f32 %v625, %v626
        %v628 = vrot.slane %v617, 4
        %v629 = vadd.f32 %v617, %v628
        %v630 = vrot.slane %v629, 2
        %v631 = vadd.f32 %v629, %v630
        %v632 = vrot.slane %v631, 1
        %v633 = vadd.f32 %v631, %v632
        %v634 = vrot.slane %v619, 4
        %v635 = vadd.f32 %v619, %v634
        %v636 = vrot.slane %v635, 2
        %v637 = vadd.f32 %v635, %v636
        %v638 = vrot.slane %v637, 1
        %v639 = vadd.f32 %v637, %v638
        %v640 = vrot.slane %v621, 4
        %v641 = vadd.f32 %v621, %v640
        %v642 = vrot.slane %v641, 2
        %v643 = vadd.f32 %v641, %v642
        %v644 = vrot.slane %v643, 1
        %v645 = vadd.f32 %v643, %v644
        %v646 = vrcp.pop %v627
        %v647 = vmul.f32 %v615, %v646
        %v648 = vrcp.pop %v633
        %v649 = vmul.f32 %v617, %v648
        %v650 = vrcp.pop %v639
        %v651 = vmul.f32 %v619, %v650
        %v652 = vrcp.pop %v645
        %v653 = vmul.f32 %v621, %v652
        %654 = vst [vmem:[%s164] sm:$0xff] %v647
        %655 = vst [vmem:[%s164 + $0x8] sm:$0xff] %v649
        %656 = vst [vmem:[%s164 + $0x10] sm:$0xff] %v651
        %657 = vst [vmem:[%s164 + $0x18] sm:$0xff] %v653
        %s658 = sand.u32 %s93, 1
        %s659 = scalar_lea.sflag [#allocation3], %s658
        %s660 = sand.u32 %s93, 1
        %s661 = smul.addr %s660, 32
        %s662 = scalar_lea.vmem [#allocation2], %s661
        // Predicated region
        $region33: #{policy_net_forward.1} parent=31 // pred_check
          %p663 = pneg %p103
        $region34: #{policy_net_forward.1} parent=31 // pred_check_branch
          %665 = sbr.rel (%p663) target = $region36
        $region35: #{policy_net_forward.1} parent=31 // pred_region
          %s666 = smul.u32 4, %s17
          %s668 = ssub.s32 512, 512
          %669 = vsyncadd %s659, %s668
          %s670 = smul.addr %s666, 128
          %s671 = scalar_lea.hbm %s3, %s670
          %s673 = sshll.u32 %s662, 4
          %s674 = int_to_ptr.vmem [resolvable:$true] %s673
          %676 = dma.vmem_to_hbm [thread:$0]  %s674, 512, %s671, %s659
        $region36: #{policy_net_forward.1} parent=31 // pred_fallthru
          _
      $region32: #{policy_net_forward.1} parent=5 // pred_fallthru
        _
      %p677 = scmp.le.s32.totalorder 2, %s12
      // Predicated region
      $region37: #{policy_net_forward.1} parent=5 // pred_check
        %p678 = pneg %p677
      $region38: #{policy_net_forward.1} parent=5 // pred_check_branch
        %680 = sbr.rel (%p678) target = $region40
      $region39: #{policy_net_forward.1} parent=5 // pred_region
        %s681 = ssub.s32 %s12, 2
        // Predicated region
        $region41: #{policy_net_forward.1} parent=39 // pred_check
          %p682 = pneg %p109
        $region42: #{policy_net_forward.1} parent=39 // pred_check_branch
          %684 = sbr.rel (%p682) target = $region44
        $region43: #{policy_net_forward.1} parent=39 // pred_region
          %s685 = sand.u32 %s94, 1
          %s686 = scalar_lea.sflag [#allocation3], %s685
          %s687 = sand.u32 %s94, 1
          %s688 = smul.addr %s687, 32
          %s689 = scalar_lea.vmem [#allocation2], %s688
          %690 = dma.done %s686, 512
        $region44: #{policy_net_forward.1} parent=39 // pred_fallthru
          _
      $region40: #{policy_net_forward.1} parent=5 // pred_fallthru
        _
    $region6: #{policy_net_forward.1} parent=1 // loop_footer
      %s16 = sadd.s32 1, %s12
    $region7: #{policy_net_forward.1} parent=1 // loop_footer_branch
      %11 = sbr.rel target = $region3
    $region8: #{policy_net_forward.1} parent=1 // loop_exit
      _
    %691 = vsyncpa [#allocation3], 1
    %s692 = scalar_lea.sflag [#allocation3], 1
    %693 = vsyncpa %s692, 1

</llo_original>
